<compile_context>
chip_gen: v7x
topology: tpu7x:2x2x1
jax: 0.10.0
libtpu: 0.0.40
codegen_flags: <defaults>
</compile_context>

<pallas_src>
import jax
import jax.numpy as jnp
import numpy as np
from jax import lax
from jax.experimental import pallas as pl
from jax.experimental.pallas import tpu as pltpu


def _round_up(x, m):
    return ((x + m - 1) // m) * m


def _mlp_kernel(x_ref, w1_ref, b1_ref, w2t_ref, b2t_ref, o_ref):
    # x:   (TB, F)     bf16
    # w1:  (F, Hp)     bf16     b1:  (1, Hp)    f32
    # w2t: (Osub, Hp)  bf16     b2t: (Osub, 1)  f32
    # o:   (Osub, TB)  f32   -- outputs on sublanes, batch on lanes (lane-dense store)
    x = x_ref[...]
    # First linear (bf16 MXU, f32 accumulate) + bias + ReLU.
    h = jnp.dot(x, w1_ref[...], preferred_element_type=jnp.float32) + b1_ref[...]
    h = jnp.maximum(h, 0.0)
    # Dropout is identity at inference (eval mode).
    hb = h.astype(w2t_ref.dtype)  # bf16 for the MXU
    # Second linear, computed directly in transposed orientation:
    # (Osub, Hp) x (TB, Hp) contracted over Hp -> (Osub, TB), f32 accumulate.
    out_t = lax.dot_general(
        w2t_ref[...], hb,
        dimension_numbers=(((1,), (1,)), ((), ())),
        preferred_element_type=jnp.float32,
    ) + b2t_ref[...]
    o_ref[...] = out_t


def make_mlp_forward(w1, b1, w2, b2, *, max_tile_b=512):
    """w1: (F, H); b1: (H,); w2: (H, O); b2: (O,).

    Pads/casts weights ONCE (hoisted out of the hot path) and returns a jitted
    forward: x (B, F) f32 -> (B, O) f32.
    """
    F, H = w1.shape
    O = w2.shape[1]
    H_pad = _round_up(H, 128)   # lane-dense hidden dim
    O_sub = _round_up(O, 8)     # output dim lives on sublanes of the transposed output

    w1_p = jnp.pad(jnp.asarray(w1), ((0, 0), (0, H_pad - H))).astype(jnp.bfloat16)
    b1_p = jnp.pad(jnp.asarray(b1).reshape(1, H),
                   ((0, 0), (0, H_pad - H))).astype(jnp.float32)
    w2t_p = jnp.pad(jnp.asarray(w2).T,
                    ((0, O_sub - O), (0, H_pad - H))).astype(jnp.bfloat16)
    b2t_p = jnp.pad(jnp.asarray(b2).reshape(O, 1),
                    ((0, O_sub - O), (0, 0))).astype(jnp.float32)

    @jax.jit
    def forward(x):
        B = x.shape[0]
        # Batch rows map to lanes of the transposed output -> tiles are multiples
        # of 128. Use a single grid step unless the batch is large.
        B_pad = _round_up(B, 128)
        tile_b = B_pad if B_pad <= max_tile_b else max_tile_b
        B_pad = _round_up(B_pad, tile_b)
        num_steps = B_pad // tile_b

        x_p = jnp.pad(x, ((0, B_pad - B), (0, 0))).astype(jnp.bfloat16)

        flops = 2 * B_pad * H_pad * (F + O_sub)
        bytes_accessed = (
            x_p.size * 2 + w1_p.size * 2 + b1_p.size * 4
            + w2t_p.size * 2 + b2t_p.size * 4 + O_sub * B_pad * 4
        )

        out_t = pl.pallas_call(
            _mlp_kernel,
            out_shape=jax.ShapeDtypeStruct((O_sub, B_pad), jnp.float32),
            grid=(num_steps,),
            in_specs=[
                # Batch tiles stream through; weights/biases stay VMEM-resident.
                pl.BlockSpec((tile_b, F), lambda i: (i, 0)),
                pl.BlockSpec((F, H_pad), lambda i: (0, 0)),
                pl.BlockSpec((1, H_pad), lambda i: (0, 0)),
                pl.BlockSpec((O_sub, H_pad), lambda i: (0, 0)),
                pl.BlockSpec((O_sub, 1), lambda i: (0, 0)),
            ],
            out_specs=pl.BlockSpec((O_sub, tile_b), lambda i: (0, i)),
            compiler_params=pltpu.CompilerParams(
                # Only shard batch tiles across v7x's 2 TCs when there is
                # enough work per core; single-step grids stay on one TC.
                dimension_semantics=(
                    ("parallel",) if num_steps >= 4 else ("arbitrary",)),
                # Explicit scoped-VMEM limit (scaling guard; tiny at H=128).
                vmem_limit_bytes=32 * 1024 * 1024,
            ),
            cost_estimate=pl.CostEstimate(
                flops=flops, transcendentals=0, bytes_accessed=bytes_accessed),
        )(x_p, w1_p, b1_p, w2t_p, b2t_p)

        # Slice off padding and restore (B, O) orientation; fuses under jit.
        return out_t[:O, :B].T

    return forward


def xavier_normal(key, fan_in, fan_out, dtype=jnp.float32):
    # Matches torch.nn.init.xavier_normal_: std = gain * sqrt(2/(fan_in+fan_out)).
    std = float(np.sqrt(2.0 / (fan_in + fan_out)))
    # Sample in PyTorch's (fan_out, fan_in) layout, then transpose so the
    # kernel sees (in_features, out_features); numerically equal to x @ W.T.
    w = jax.random.normal(key, (fan_out, fan_in), dtype) * std
    return w.T


if __name__ == "__main__":
    # Shapes implied by the module: num_features=4, num_outs=3, n_hid=128 (default).
    batch = 256
    num_features = 4
    num_outs = 3
    n_hid = 128

    key = jax.random.PRNGKey(0)
    kx, kw1, kw2 = jax.random.split(key, 3)

    x = jax.random.normal(kx, (batch, num_features), jnp.float32)

    w1 = xavier_normal(kw1, num_features, n_hid)   # (F, H)
    b1 = jnp.zeros((n_hid,), jnp.float32)          # bias init = 0
    w2 = xavier_normal(kw2, n_hid, num_outs)       # (H, O)
    b2 = jnp.zeros((num_outs,), jnp.float32)

    mlp = make_mlp_forward(w1, b1, w2, b2)         # weight prep hoisted here
    out = jax.block_until_ready(mlp(x))
    assert out.shape == (batch, num_outs)

    # Reference check in plain f32 JAX (kernel uses bf16 inputs -> looser tol).
    ref = jnp.maximum(x @ w1 + b1[None, :], 0.0) @ w2 + b2[None, :]
    np.testing.assert_allclose(np.asarray(out), np.asarray(ref), rtol=2e-2, atol=2e-2)

    print("KERNEL_OK")
</pallas_src>

<mosaic_0001>
module attributes {stable_mosaic.version = 11 : i64} {
  func.func @_mlp_kernel(%arg0: i32, %arg1: memref<256x4xbf16, #tpu.memory_space<vmem>>, %arg2: memref<4x128xbf16, #tpu.memory_space<vmem>>, %arg3: memref<1x128xf32, #tpu.memory_space<vmem>>, %arg4: memref<8x128xbf16, #tpu.memory_space<vmem>>, %arg5: memref<8x1xf32, #tpu.memory_space<vmem>>, %arg6: memref<8x256xf32, #tpu.memory_space<vmem>>) attributes {dimension_semantics = [#tpu.dimension_semantics<arbitrary>], iteration_bounds = array<i64: 1>, scalar_prefetch = 0 : i64, scratch_operands = 0 : i64, tpu.core_type = #tpu.core_type<tc>, window_params = [{transform_indices = @transform_0, window_bounds = array<i64: 256, 4>}, {pipeline_mode = #tpu.pipeline_mode<synchronous>, transform_indices = @transform_1, window_bounds = array<i64: 4, 128>}, {pipeline_mode = #tpu.pipeline_mode<synchronous>, transform_indices = @transform_2, window_bounds = array<i64: 1, 128>}, {pipeline_mode = #tpu.pipeline_mode<synchronous>, transform_indices = @transform_3, window_bounds = array<i64: 8, 128>}, {pipeline_mode = #tpu.pipeline_mode<synchronous>, transform_indices = @transform_4, window_bounds = array<i64: 8, 1>}, {transform_indices = @transform_5, window_bounds = array<i64: 8, 256>}]} {
    %c0 = arith.constant 0 : index
    %c0_0 = arith.constant 0 : index
    %0 = vector.load %arg1[%c0, %c0_0] : memref<256x4xbf16, #tpu.memory_space<vmem>>, vector<256x4xbf16>
    %c0_1 = arith.constant 0 : index
    %c0_2 = arith.constant 0 : index
    %1 = vector.load %arg2[%c0_1, %c0_2] : memref<4x128xbf16, #tpu.memory_space<vmem>>, vector<4x128xbf16>
    %cst = arith.constant dense<0.000000e+00> : vector<256x128xf32>
    %2 = tpu.matmul %0, %1, %cst {dimension_numbers = #tpu.dot_dimension_numbers<[1], [0], [0], [1], [0, 0, 1, 1], [], []>} : vector<256x4xbf16>, vector<4x128xbf16>, vector<256x128xf32> -> vector<256x128xf32>
    %c0_3 = arith.constant 0 : index
    %c0_4 = arith.constant 0 : index
    %3 = vector.load %arg3[%c0_3, %c0_4] : memref<1x128xf32, #tpu.memory_space<vmem>>, vector<1x128xf32>
    %4 = vector.broadcast %3 : vector<1x128xf32> to vector<256x128xf32>
    %5 = arith.addf %2, %4 : vector<256x128xf32>
    %cst_5 = arith.constant 0.000000e+00 : f32
    %6 = vector.broadcast %cst_5 : f32 to vector<256x128xf32>
    %7 = arith.maximumf %5, %6 : vector<256x128xf32>
    %8 = arith.truncf %7 : vector<256x128xf32> to vector<256x128xbf16>
    %c0_6 = arith.constant 0 : index
    %c0_7 = arith.constant 0 : index
    %9 = vector.load %arg4[%c0_6, %c0_7] : memref<8x128xbf16, #tpu.memory_space<vmem>>, vector<8x128xbf16>
    %cst_8 = arith.constant dense<0.000000e+00> : vector<8x256xf32>
    %10 = tpu.matmul %9, %8, %cst_8 {dimension_numbers = #tpu.dot_dimension_numbers<[1], [1], [0], [0], [0, 0, 1, 0], [], []>} : vector<8x128xbf16>, vector<256x128xbf16>, vector<8x256xf32> -> vector<8x256xf32>
    %c0_9 = arith.constant 0 : index
    %c0_10 = arith.constant 0 : index
    %11 = vector.load %arg5[%c0_9, %c0_10] : memref<8x1xf32, #tpu.memory_space<vmem>>, vector<8x1xf32>
    %12 = vector.broadcast %11 : vector<8x1xf32> to vector<8x256xf32>
    %13 = arith.addf %10, %12 : vector<8x256xf32>
    %c0_11 = arith.constant 0 : index
    %c0_12 = arith.constant 0 : index
    %14 = vector.load %arg6[%c0_11, %c0_12] : memref<8x256xf32, #tpu.memory_space<vmem>>, vector<8x256xf32>
    tpu.vector_store %arg6[%c0_11, %c0_12], %13 {strides = array<i32>} : memref<8x256xf32, #tpu.memory_space<vmem>>, vector<8x256xf32>,
    return
  }
  func.func @transform_0(%arg0: i32) -> (i32, i32) {
    %c0_i32 = arith.constant 0 : i32
    %c0_i32_0 = arith.constant 0 : i32
    return %arg0, %c0_i32 : i32, i32
  }
  func.func @transform_1(%arg0: i32) -> (i32, i32) {
    %c0_i32 = arith.constant 0 : i32
    %c0_i32_0 = arith.constant 0 : i32
    %c0_i32_1 = arith.constant 0 : i32
    return %c0_i32, %c0_i32_0 : i32, i32
  }
  func.func @transform_2(%arg0: i32) -> (i32, i32) {
    %c0_i32 = arith.constant 0 : i32
    %c0_i32_0 = arith.constant 0 : i32
    %c0_i32_1 = arith.constant 0 : i32
    return %c0_i32, %c0_i32_0 : i32, i32
  }
  func.func @transform_3(%arg0: i32) -> (i32, i32) {
    %c0_i32 = arith.constant 0 : i32
    %c0_i32_0 = arith.constant 0 : i32
    %c0_i32_1 = arith.constant 0 : i32
    return %c0_i32, %c0_i32_0 : i32, i32
  }
  func.func @transform_4(%arg0: i32) -> (i32, i32) {
    %c0_i32 = arith.constant 0 : i32
    %c0_i32_0 = arith.constant 0 : i32
    %c0_i32_1 = arith.constant 0 : i32
    return %c0_i32, %c0_i32_0 : i32, i32
  }
  func.func @transform_5(%arg0: i32) -> (i32, i32) {
    %c0_i32 = arith.constant 0 : i32
    %c0_i32_0 = arith.constant 0 : i32
    return %c0_i32, %arg0 : i32, i32
  }
}

</mosaic_0001>

<llo_original>
// kernel: forward.1
$region0: #{forward.1}
  #allocation0 [shape = 'u32[]', space=smem, size = 0x4, offset = 0x4, fixed_abs, tag = 'smem constant byte address 0x4 - core index']
  #allocation1 [shape = 'u32[144,128]{1,0:T(1,128)}', space=vmem, size = 0x12000, scoped, tag = 'internal scratch']
  %s0 = inlined_call_operand.vmem [shape: bf16[256,4], index: 0, kind: input, shape index: {}]
  %s1 = inlined_call_operand.vmem [shape: bf16[4,128], index: 1, kind: input, shape index: {}]
  %s2 = inlined_call_operand.vmem [shape: f32[1,128], index: 2, kind: input, shape index: {}]
  %s3 = inlined_call_operand.vmem [shape: bf16[8,128], index: 3, kind: input, shape index: {}]
  %s4 = inlined_call_operand.vmem [shape: f32[8,1], index: 4, kind: input, shape index: {}]
  %s5 = inlined_call_operand.vmem [shape: f32[8,256], index: 5, kind: output, shape index: {}]
  %s6 = sld [smem:[#allocation0]]
  $region30: #{forward.1} parent=0
    _
  %s8 = ssub.s32 1, %s6
  %s9 = scalar_select 0, %s8, %s6
  // Predicated region
  $region2: #{forward.1} parent=0 // pred_check
    _
  $region3: #{forward.1} parent=0 // pred_check_branch
    %11 = sbr.rel (0) target = $region5
  $region4: #{forward.1} parent=0 // pred_region
    _
  $region5: #{forward.1} parent=0 // pred_fallthru
    _
  // Predicated region
  $region6: #{forward.1} parent=0 // pred_check
    _
  $region7: #{forward.1} parent=0 // pred_check_branch
    %13 = sbr.rel (0) target = $region9
  $region8: #{forward.1} parent=0 // pred_region
    _
  $region9: #{forward.1} parent=0 // pred_fallthru
    _
  // Predicated region
  $region10: #{forward.1} parent=0 // pred_check
    _
  $region11: #{forward.1} parent=0 // pred_check_branch
    %15 = sbr.rel (0) target = $region13
  $region12: #{forward.1} parent=0 // pred_region
    _
  $region13: #{forward.1} parent=0 // pred_fallthru
    _
  // Predicated region
  $region14: #{forward.1} parent=0 // pred_check
    _
  $region15: #{forward.1} parent=0 // pred_check_branch
    %17 = sbr.rel (0) target = $region17
  $region16: #{forward.1} parent=0 // pred_region
    _
  $region17: #{forward.1} parent=0 // pred_fallthru
    _
  // Predicated region
  $region18: #{forward.1} parent=0 // pred_check
    _
  $region19: #{forward.1} parent=0 // pred_check_branch
    %19 = sbr.rel (0) target = $region21
  $region20: #{forward.1} parent=0 // pred_region
    _
  $region21: #{forward.1} parent=0 // pred_fallthru
    _
  %v21 = vld [vmem:[%s0] sm:$0xf]
  %v22 = vld [vmem:[%s0 + $0x4] sm:$0xf]
  %v23 = vld [vmem:[%s0 + $0x8] sm:$0xf]
  %v24 = vld [vmem:[%s0 + $0xc] sm:$0xf]
  %v25 = vld [vmem:[%s0 + $0x10] sm:$0xf]
  %v26 = vld [vmem:[%s0 + $0x14] sm:$0xf]
  %v27 = vld [vmem:[%s0 + $0x18] sm:$0xf]
  %v28 = vld [vmem:[%s0 + $0x1c] sm:$0xf]
  %v29 = vld [vmem:[%s0 + $0x20] sm:$0xf]
  %v30 = vld [vmem:[%s0 + $0x24] sm:$0xf]
  %v31 = vld [vmem:[%s0 + $0x28] sm:$0xf]
  %v32 = vld [vmem:[%s0 + $0x2c] sm:$0xf]
  %v33 = vld [vmem:[%s0 + $0x30] sm:$0xf]
  %v34 = vld [vmem:[%s0 + $0x34] sm:$0xf]
  %v35 = vld [vmem:[%s0 + $0x38] sm:$0xf]
  %v36 = vld [vmem:[%s0 + $0x3c] sm:$0xf]
  %v37 = vld [vmem:[%s0 + $0x40] sm:$0xf]
  %v38 = vld [vmem:[%s0 + $0x44] sm:$0xf]
  %v39 = vld [vmem:[%s0 + $0x48] sm:$0xf]
  %v40 = vld [vmem:[%s0 + $0x4c] sm:$0xf]
  %v41 = vld [vmem:[%s0 + $0x50] sm:$0xf]
  %v42 = vld [vmem:[%s0 + $0x54] sm:$0xf]
  %v43 = vld [vmem:[%s0 + $0x58] sm:$0xf]
  %v44 = vld [vmem:[%s0 + $0x5c] sm:$0xf]
  %v45 = vld [vmem:[%s0 + $0x60] sm:$0xf]
  %v46 = vld [vmem:[%s0 + $0x64] sm:$0xf]
  %v47 = vld [vmem:[%s0 + $0x68] sm:$0xf]
  %v48 = vld [vmem:[%s0 + $0x6c] sm:$0xf]
  %v49 = vld [vmem:[%s0 + $0x70] sm:$0xf]
  %v50 = vld [vmem:[%s0 + $0x74] sm:$0xf]
  %v51 = vld [vmem:[%s0 + $0x78] sm:$0xf]
  %v52 = vld [vmem:[%s0 + $0x7c] sm:$0xf]
  %v53 = vld [vmem:[%s1] sm:$0x3]
  %v54 = vld [vmem:[%s2] sm:$0x1]
  %v56 = vlaneseq
  %v57 = vshrl.u32 %v56, 7
  %v58 = vsub.s32 0, %v57
  %v59 = vrot.slane %v54, %v58
  %v93 = vunpack.c.l.b16 %v21
  %v94 = vunpack.c.l.b16 %v22
  %v95 = vunpack.c.l.b16 %v23
  %v96 = vunpack.c.l.b16 %v24
  %v97 = vunpack.c.l.b16 %v25
  %v98 = vunpack.c.l.b16 %v26
  %v99 = vunpack.c.l.b16 %v27
  %v100 = vunpack.c.l.b16 %v28
  %v101 = vunpack.c.l.b16 %v29
  %v102 = vunpack.c.l.b16 %v30
  %v103 = vunpack.c.l.b16 %v31
  %v104 = vunpack.c.l.b16 %v32
  %v105 = vunpack.c.l.b16 %v33
  %v106 = vunpack.c.l.b16 %v34
  %v107 = vunpack.c.l.b16 %v35
  %v108 = vunpack.c.l.b16 %v36
  %v109 = vunpack.c.l.b16 %v37
  %v110 = vunpack.c.l.b16 %v38
  %v111 = vunpack.c.l.b16 %v39
  %v112 = vunpack.c.l.b16 %v40
  %v113 = vunpack.c.l.b16 %v41
  %v114 = vunpack.c.l.b16 %v42
  %v115 = vunpack.c.l.b16 %v43
  %v116 = vunpack.c.l.b16 %v44
  %v117 = vunpack.c.l.b16 %v45
  %v118 = vunpack.c.l.b16 %v46
  %v119 = vunpack.c.l.b16 %v47
  %v120 = vunpack.c.l.b16 %v48
  %v121 = vunpack.c.l.b16 %v49
  %v122 = vunpack.c.l.b16 %v50
  %v123 = vunpack.c.l.b16 %v51
  %v124 = vunpack.c.l.b16 %v52
  %v125 = vpack.c.b16 %v94, %v93
  %v126 = vpack.c.b16 %v96, %v95
  %v127 = vpack.c.b16 %v98, %v97
  %v128 = vpack.c.b16 %v100, %v99
  %v129 = vpack.c.b16 %v102, %v101
  %v130 = vpack.c.b16 %v104, %v103
  %v131 = vpack.c.b16 %v106, %v105
  %v132 = vpack.c.b16 %v108, %v107
  %v133 = vpack.c.b16 %v110, %v109
  %v134 = vpack.c.b16 %v112, %v111
  %v135 = vpack.c.b16 %v114, %v113
  %v136 = vpack.c.b16 %v116, %v115
  %v137 = vpack.c.b16 %v118, %v117
  %v138 = vpack.c.b16 %v120, %v119
  %v139 = vpack.c.b16 %v122, %v121
  %v140 = vpack.c.b16 %v124, %v123
  %vm141 = vcmask 31744
  %v143 = vsel %vm141, %v125, 0
  %v146 = vsel %vm141, %v126, 0
  %v149 = vsel %vm141, %v127, 0
  %v152 = vsel %vm141, %v128, 0
  %v155 = vsel %vm141, %v129, 0
  %v158 = vsel %vm141, %v130, 0
  %v161 = vsel %vm141, %v131, 0
  %v164 = vsel %vm141, %v132, 0
  %v167 = vsel %vm141, %v133, 0
  %v170 = vsel %vm141, %v134, 0
  %v173 = vsel %vm141, %v135, 0
  %v176 = vsel %vm141, %v136, 0
  %v179 = vsel %vm141, %v137, 0
  %v182 = vsel %vm141, %v138, 0
  %v185 = vsel %vm141, %v139, 0
  %v188 = vsel %vm141, %v140, 0
  %vm190 = vcmask 1041408
  %v192 = vsel %vm190, %v53, 0
  %194 = vmatprep.subr.bf16.mxu0 0
  %195 = vmatpush1.bf16.msra.mxu0 %v192
  %196 = vmatprep.subr.bf16.mxu0 0
  %197 = vmatpush1.bf16.msra.mxu0 0
  %198 = vmatprep.subr.bf16.mxu0 0
  %199 = vmatpush1.bf16.msra.mxu0 0
  %200 = vmatprep.subr.bf16.mxu0 0
  %201 = vmatpush1.bf16.msra.mxu0 0
  %202 = vmatprep.subr.bf16.mxu0 0
  %203 = vmatpush1.bf16.msra.mxu0 0
  %204 = vmatprep.subr.bf16.mxu0 0
  %205 = vmatpush1.bf16.msra.mxu0 0
  %206 = vmatprep.subr.bf16.mxu0 0
  %207 = vmatpush1.bf16.msra.mxu0 0
  %208 = vmatprep.subr.bf16.mxu0 0
  %209 = vmatpush1.bf16.msra.mxu0 0
  %210 = vmatprep.subr.bf16.mxu0 0
  %211 = vmatpush1.bf16.msra.mxu0 0
  %212 = vmatprep.subr.bf16.mxu0 0
  %213 = vmatpush1.bf16.msra.mxu0 0
  %214 = vmatprep.subr.bf16.mxu0 0
  %215 = vmatpush1.bf16.msra.mxu0 0
  %216 = vmatprep.subr.bf16.mxu0 0
  %217 = vmatpush1.bf16.msra.mxu0 0
  %218 = vmatprep.subr.bf16.mxu0 0
  %219 = vmatpush1.bf16.msra.mxu0 0
  %220 = vmatprep.subr.bf16.mxu0 0
  %221 = vmatpush1.bf16.msra.mxu0 0
  %222 = vmatprep.subr.bf16.mxu0 0
  %223 = vmatpush1.bf16.msra.mxu0 0
  %224 = vmatprep.subr.bf16.mxu0 0
  %225 = vmatpush1.bf16.msra.mxu0 0
  %226 = vmatprep.mubr.bf16.mxu0 0
  %227 = vmatmul.mubr.bf16.gmra.mrb[0].mxu0 %v143
  %v228 = vpop.f32.mrb[0].mxu0
  %v229 = vadd.f32 %v59, %v228
  %v230 = vpop.f32.mrb[0].mxu0
  %v231 = vpop.f32.mrb[0].mxu0
  %v232 = vadd.f32 %v59, %v231
  %v233 = vpop.f32.mrb[0].mxu0
  %234 = vmatprep.mubr.bf16.mxu0 0
  %235 = vmatmul.mubr.bf16.gmra.mrb[0].mxu0 %v146
  %v236 = vpop.f32.mrb[0].mxu0
  %v237 = vadd.f32 %v59, %v236
  %v238 = vpop.f32.mrb[0].mxu0
  %v239 = vpop.f32.mrb[0].mxu0
  %v240 = vadd.f32 %v59, %v239
  %v241 = vpop.f32.mrb[0].mxu0
  %242 = vmatprep.mubr.bf16.mxu0 0
  %243 = vmatmul.mubr.bf16.gmra.mrb[0].mxu0 %v149
  %v244 = vpop.f32.mrb[0].mxu0
  %v245 = vadd.f32 %v59, %v244
  %v246 = vpop.f32.mrb[0].mxu0
  %v247 = vpop.f32.mrb[0].mxu0
  %v248 = vadd.f32 %v59, %v247
  %v249 = vpop.f32.mrb[0].mxu0
  %250 = vmatprep.mubr.bf16.mxu0 0
  %251 = vmatmul.mubr.bf16.gmra.mrb[0].mxu0 %v152
  %v252 = vpop.f32.mrb[0].mxu0
  %v253 = vadd.f32 %v59, %v252
  %v254 = vpop.f32.mrb[0].mxu0
  %v255 = vpop.f32.mrb[0].mxu0
  %v256 = vadd.f32 %v59, %v255
  %v257 = vpop.f32.mrb[0].mxu0
  %258 = vmatprep.mubr.bf16.mxu0 0
  %259 = vmatmul.mubr.bf16.gmra.mrb[0].mxu0 %v155
  %v260 = vpop.f32.mrb[0].mxu0
  %v261 = vadd.f32 %v59, %v260
  %v262 = vpop.f32.mrb[0].mxu0
  %v263 = vpop.f32.mrb[0].mxu0
  %v264 = vadd.f32 %v59, %v263
  %v265 = vpop.f32.mrb[0].mxu0
  %266 = vmatprep.mubr.bf16.mxu0 0
  %267 = vmatmul.mubr.bf16.gmra.mrb[0].mxu0 %v158
  %v268 = vpop.f32.mrb[0].mxu0
  %v269 = vadd.f32 %v59, %v268
  %v270 = vpop.f32.mrb[0].mxu0
  %v271 = vpop.f32.mrb[0].mxu0
  %v272 = vadd.f32 %v59, %v271
  %v273 = vpop.f32.mrb[0].mxu0
  %274 = vmatprep.mubr.bf16.mxu0 0
  %275 = vmatmul.mubr.bf16.gmra.mrb[0].mxu0 %v161
  %v276 = vpop.f32.mrb[0].mxu0
  %v277 = vadd.f32 %v59, %v276
  %v278 = vpop.f32.mrb[0].mxu0
  %v279 = vpop.f32.mrb[0].mxu0
  %v280 = vadd.f32 %v59, %v279
  %v281 = vpop.f32.mrb[0].mxu0
  %282 = vmatprep.mubr.bf16.mxu0 0
  %283 = vmatmul.mubr.bf16.gmra.mrb[0].mxu0 %v164
  %v284 = vpop.f32.mrb[0].mxu0
  %v285 = vadd.f32 %v59, %v284
  %v286 = vpop.f32.mrb[0].mxu0
  %v287 = vpop.f32.mrb[0].mxu0
  %v288 = vadd.f32 %v59, %v287
  %v289 = vpop.f32.mrb[0].mxu0
  %290 = vmatprep.mubr.bf16.mxu0 0
  %291 = vmatmul.mubr.bf16.gmra.mrb[0].mxu0 %v167
  %v292 = vpop.f32.mrb[0].mxu0
  %v293 = vadd.f32 %v59, %v292
  %v294 = vpop.f32.mrb[0].mxu0
  %v295 = vpop.f32.mrb[0].mxu0
  %v296 = vadd.f32 %v59, %v295
  %v297 = vpop.f32.mrb[0].mxu0
  %298 = vmatprep.mubr.bf16.mxu0 0
  %299 = vmatmul.mubr.bf16.gmra.mrb[0].mxu0 %v170
  %v300 = vpop.f32.mrb[0].mxu0
  %v301 = vadd.f32 %v59, %v300
  %v302 = vpop.f32.mrb[0].mxu0
  %v303 = vpop.f32.mrb[0].mxu0
  %v304 = vadd.f32 %v59, %v303
  %v305 = vpop.f32.mrb[0].mxu0
  %306 = vmatprep.mubr.bf16.mxu0 0
  %307 = vmatmul.mubr.bf16.gmra.mrb[0].mxu0 %v173
  %v308 = vpop.f32.mrb[0].mxu0
  %v309 = vadd.f32 %v59, %v308
  %v310 = vpop.f32.mrb[0].mxu0
  %v311 = vpop.f32.mrb[0].mxu0
  %v312 = vadd.f32 %v59, %v311
  %v313 = vpop.f32.mrb[0].mxu0
  %314 = vmatprep.mubr.bf16.mxu0 0
  %315 = vmatmul.mubr.bf16.gmra.mrb[0].mxu0 %v176
  %v316 = vpop.f32.mrb[0].mxu0
  %v317 = vadd.f32 %v59, %v316
  %v318 = vpop.f32.mrb[0].mxu0
  %v319 = vpop.f32.mrb[0].mxu0
  %v320 = vadd.f32 %v59, %v319
  %v321 = vpop.f32.mrb[0].mxu0
  %322 = vmatprep.mubr.bf16.mxu0 0
  %323 = vmatmul.mubr.bf16.gmra.mrb[0].mxu0 %v179
  %v324 = vpop.f32.mrb[0].mxu0
  %v325 = vadd.f32 %v59, %v324
  %v326 = vpop.f32.mrb[0].mxu0
  %v327 = vpop.f32.mrb[0].mxu0
  %v328 = vadd.f32 %v59, %v327
  %v329 = vpop.f32.mrb[0].mxu0
  %330 = vmatprep.mubr.bf16.mxu0 0
  %331 = vmatmul.mubr.bf16.gmra.mrb[0].mxu0 %v182
  %v332 = vpop.f32.mrb[0].mxu0
  %v333 = vadd.f32 %v59, %v332
  %v334 = vpop.f32.mrb[0].mxu0
  %v335 = vpop.f32.mrb[0].mxu0
  %v336 = vadd.f32 %v59, %v335
  %v337 = vpop.f32.mrb[0].mxu0
  %338 = vmatprep.mubr.bf16.mxu0 0
  %339 = vmatmul.mubr.bf16.gmra.mrb[0].mxu0 %v185
  %v340 = vpop.f32.mrb[0].mxu0
  %v341 = vadd.f32 %v59, %v340
  %v342 = vpop.f32.mrb[0].mxu0
  %v343 = vpop.f32.mrb[0].mxu0
  %v344 = vadd.f32 %v59, %v343
  %v345 = vpop.f32.mrb[0].mxu0
  %346 = vmatprep.mubr.bf16.mxu0 0
  %347 = vmatmul.mubr.bf16.gmra.mrb[0].mxu0 %v188
  %v348 = vpop.f32.mrb[0].mxu0
  %v349 = vadd.f32 %v59, %v348
  %v350 = vpop.f32.mrb[0].mxu0
  %v351 = vpop.f32.mrb[0].mxu0
  %v352 = vadd.f32 %v59, %v351
  %v353 = vpop.f32.mrb[0].mxu0
  %354 = vdwg.mxu0
  %v355 = vmax.f32 %v229, 0.0
  %v356 = vmax.f32 %v232, 0.0
  %v357 = vmax.f32 %v237, 0.0
  %v358 = vmax.f32 %v240, 0.0
  %v359 = vmax.f32 %v245, 0.0
  %v360 = vmax.f32 %v248, 0.0
  %v361 = vmax.f32 %v253, 0.0
  %v362 = vmax.f32 %v256, 0.0
  %v363 = vmax.f32 %v261, 0.0
  %v364 = vmax.f32 %v264, 0.0
  %v365 = vmax.f32 %v269, 0.0
  %v366 = vmax.f32 %v272, 0.0
  %v367 = vmax.f32 %v277, 0.0
  %v368 = vmax.f32 %v280, 0.0
  %v369 = vmax.f32 %v285, 0.0
  %v370 = vmax.f32 %v288, 0.0
  %v371 = vmax.f32 %v293, 0.0
  %v372 = vmax.f32 %v296, 0.0
  %v373 = vmax.f32 %v301, 0.0
  %v374 = vmax.f32 %v304, 0.0
  %v375 = vmax.f32 %v309, 0.0
  %v376 = vmax.f32 %v312, 0.0
  %v377 = vmax.f32 %v317, 0.0
  %v378 = vmax.f32 %v320, 0.0
  %v379 = vmax.f32 %v325, 0.0
  %v380 = vmax.f32 %v328, 0.0
  %v381 = vmax.f32 %v333, 0.0
  %v382 = vmax.f32 %v336, 0.0
  %v383 = vmax.f32 %v341, 0.0
  %v384 = vmax.f32 %v344, 0.0
  %v385 = vmax.f32 %v349, 0.0
  %v386 = vmax.f32 %v352, 0.0
  %v387 = vpack.c.bf16 %v356, %v355
  %v388 = vpack.c.bf16 %v358, %v357
  %v389 = vpack.c.bf16 %v360, %v359
  %v390 = vpack.c.bf16 %v362, %v361
  %v391 = vpack.c.bf16 %v364, %v363
  %v392 = vpack.c.bf16 %v366, %v365
  %v393 = vpack.c.bf16 %v368, %v367
  %v394 = vpack.c.bf16 %v370, %v369
  %v395 = vpack.c.bf16 %v372, %v371
  %v396 = vpack.c.bf16 %v374, %v373
  %v397 = vpack.c.bf16 %v376, %v375
  %v398 = vpack.c.bf16 %v378, %v377
  %v399 = vpack.c.bf16 %v380, %v379
  %v400 = vpack.c.bf16 %v382, %v381
  %v401 = vpack.c.bf16 %v384, %v383
  %v402 = vpack.c.bf16 %v386, %v385
  %v403 = vld [vmem:[%s3] sm:$0xf]
  %v404 = vld [vmem:[%s4] sm:$0xff]
  %406 = vset.pattern.permute.xlu0 0
  %407 = vperm.xlu0 %406, %v404
  %v408 = vpop.permute.xlu0 %407
  %410 = vmatprep.subr.bf16.mxu0 0
  %411 = vmatpush1.bf16.xpose.msra.mxu0 %v387
  %412 = vmatprep.subr.bf16.mxu0 0
  %413 = vmatpush1.bf16.xpose.msra.mxu0 %v388
  %414 = vmatprep.subr.bf16.mxu0 0
  %415 = vmatpush1.bf16.xpose.msra.mxu0 %v389
  %416 = vmatprep.subr.bf16.mxu0 0
  %417 = vmatpush1.bf16.xpose.msra.mxu0 %v390
  %418 = vmatprep.subr.bf16.mxu0 0
  %419 = vmatpush1.bf16.xpose.msra.mxu0 %v391
  %420 = vmatprep.subr.bf16.mxu0 0
  %421 = vmatpush1.bf16.xpose.msra.mxu0 %v392
  %422 = vmatprep.subr.bf16.mxu0 0
  %423 = vmatpush1.bf16.xpose.msra.mxu0 %v393
  %424 = vmatprep.subr.bf16.mxu0 0
  %425 = vmatpush1.bf16.xpose.msra.mxu0 %v394
  %426 = vmatprep.subr.bf16.mxu0 0
  %427 = vmatpush1.bf16.xpose.msra.mxu0 %v395
  %428 = vmatprep.subr.bf16.mxu0 0
  %429 = vmatpush1.bf16.xpose.msra.mxu0 %v396
  %430 = vmatprep.subr.bf16.mxu0 0
  %431 = vmatpush1.bf16.xpose.msra.mxu0 %v397
  %432 = vmatprep.subr.bf16.mxu0 0
  %433 = vmatpush1.bf16.xpose.msra.mxu0 %v398
  %434 = vmatprep.subr.bf16.mxu0 0
  %435 = vmatpush1.bf16.xpose.msra.mxu0 %v399
  %436 = vmatprep.subr.bf16.mxu0 0
  %437 = vmatpush1.bf16.xpose.msra.mxu0 %v400
  %438 = vmatprep.subr.bf16.mxu0 0
  %439 = vmatpush1.bf16.xpose.msra.mxu0 %v401
  %440 = vmatprep.subr.bf16.mxu0 0
  %441 = vmatpush1.bf16.xpose.msra.mxu0 %v402
  %442 = vmatprep.mubr.bf16.mxu0 0
  %443 = vmatmul.mubr.bf16.gmra.mrb[0].mxu0 %v403
  %v444 = vpop.f32.mrb[0].mxu0
  %v445 = vadd.f32 %v408, %v444
  %v446 = vpop.f32.mrb[0].mxu0
  %v447 = vadd.f32 %v408, %v446
  %v448 = vpop.f32.mrb[0].mxu0
  %v449 = vpop.f32.mrb[0].mxu0
  %450 = vdwg.mxu0
  %451 = vst [vmem:[%s5] sm:$0xff] %v445
  %452 = vst [vmem:[%s5 + $0x8] sm:$0xff] %v447
  // Predicated region
  $region22: #{forward.1} parent=0 // pred_check
    _
  $region23: #{forward.1} parent=0 // pred_check_branch
    %454 = sbr.rel (0) target = $region25
  $region24: #{forward.1} parent=0 // pred_region
    _
  $region25: #{forward.1} parent=0 // pred_fallthru
    _
  // Predicated region
  $region26: #{forward.1} parent=0 // pred_check
    _
  $region27: #{forward.1} parent=0 // pred_check_branch
    %456 = sbr.rel (0) target = $region29
  $region28: #{forward.1} parent=0 // pred_region
    _
  $region29: #{forward.1} parent=0 // pred_fallthru
    _

</llo_original>
